<compile_context>
chip_gen: v5e
topology: v5e:2x2
jax: 0.10.0
libtpu: 0.0.40
codegen_flags: <defaults>
</compile_context>

<pallas_src>
import numpy as np
import jax
import jax.numpy as jnp
from jax import lax
from jax.experimental import pallas as pl
from jax.experimental.pallas import tpu as pltpu


def pos_embed_kernel(x_ref, w_ref, b_ref, cls_ref, pos_ref, o_ref):
    # x_ref:   (1, C, TS)  -- channels on sublanes, tokens lane-dense
    #                         (token 0 of the global array is a zero pad row)
    # w_ref:   (C, H)      -- projection weight (in_channels, hidden), resident
    # b_ref:   (1, H)      -- projection bias, resident
    # cls_ref: (1, H)      -- cls token, resident
    # pos_ref: (TS, H)     -- position_embeddings tile (rows 0..S)
    # o_ref:   (1, TS, H)
    proj = lax.dot_general(
        x_ref[0], w_ref[...],
        dimension_numbers=(((0,), (0,)), ((), ())),   # contract over C
        preferred_element_type=jnp.float32)           # (TS, H)
    o_ref[0] = (proj + pos_ref[...] + b_ref[...]).astype(o_ref.dtype)

    # First token tile owns output row 0: cls_token + position_embeddings[0]
    # (the zero-padded x row contributed 0 @ w there; overwrite it).
    @pl.when(pl.program_id(0) == 0)
    def _():
        o_ref[0, 0:1, :] = (cls_ref[...] + pos_ref[0:1, :]).astype(o_ref.dtype)


def pos_embedding(x, w, b, cls_token, pos_emb, *, token_tile_cap=512):
    """x: (B, C, D, W, H) f32 -> (B, S+1, hidden) f32 (eval-mode dropout)."""
    B, C, D, W, Hsp = x.shape
    S = D * W * Hsp
    S1 = S + 1
    hidden = w.shape[1]

    # flatten(2) only -- NO transpose (free reshape); prepend one zero token
    # so output row t aligns with x_pad token t and pos_emb row t.
    x_bcs = x.reshape(B, C, S)
    x_pad = jnp.pad(x_bcs, ((0, 0), (0, 0), (1, 0)))          # (B, C, S+1)

    pos2 = pos_emb.reshape(S1, hidden)                        # (S+1, H), free
    b2 = b.reshape(1, hidden)
    cls2 = cls_token.reshape(1, hidden)

    # Token tile: full extent when small (always legal), else a multiple of
    # 128 capped for VMEM; the last (partial) tile is masked by Pallas.
    if S1 <= token_tile_cap:
        TS = S1
    else:
        assert token_tile_cap % 128 == 0
        TS = token_tile_cap
    num_tb = pl.cdiv(S1, TS)

    out = pl.pallas_call(
        pos_embed_kernel,
        out_shape=jax.ShapeDtypeStruct((B, S1, hidden), jnp.float32),
        grid=(num_tb, B),                                     # batch innermost
        in_specs=[
            pl.BlockSpec((1, C, TS), lambda j, i: (i, 0, j)),     # x_pad
            pl.BlockSpec((C, hidden), lambda j, i: (0, 0)),       # w (resident)
            pl.BlockSpec((1, hidden), lambda j, i: (0, 0)),       # b (resident)
            pl.BlockSpec((1, hidden), lambda j, i: (0, 0)),       # cls (resident)
            pl.BlockSpec((TS, hidden), lambda j, i: (j, 0)),      # pos (per tile)
        ],
        out_specs=pl.BlockSpec((1, TS, hidden), lambda j, i: (i, j, 0)),
        compiler_params=pltpu.CompilerParams(
            dimension_semantics=("parallel", "parallel")),
    )(x_pad, w, b2, cls2, pos2)

    # Dropout: eval-mode identity.
    # TODO(synk): training-mode dropout (pltpu.prng_seed + prng_random_bits mask).
    return out


if __name__ == "__main__":
    key = jax.random.PRNGKey(0)
    B, C = 2, 4
    in_size = (2, 4, 4)            # D, W, H  -> seq_len = 32
    hidden = 32                    # toy hidden; real ViT (>=256) is lane-dense
    S = int(np.prod(in_size))

    k1, k2, k3, k4, k5 = jax.random.split(key, 5)
    x = jax.random.normal(k1, (B, C) + in_size, dtype=jnp.float32)
    w = jax.random.normal(k2, (C, hidden), dtype=jnp.float32) * 0.02
    b = jax.random.normal(k3, (hidden,), dtype=jnp.float32) * 0.02
    cls_token = jax.random.normal(k4, (1, 1, hidden), dtype=jnp.float32)
    pos_emb = jax.random.normal(k5, (1, S + 1, hidden), dtype=jnp.float32)

    out = pos_embedding(x, w, b, cls_token, pos_emb)
    out = jax.block_until_ready(out)

    # Pure-JAX reference (mirrors the PyTorch forward).
    x_bsc = jnp.transpose(x.reshape(B, C, S), (0, 2, 1))
    proj = x_bsc @ w + b
    cls_rows_ref = jnp.broadcast_to(cls_token, (B, 1, hidden))
    ref = jnp.concatenate([cls_rows_ref, proj], axis=1) + pos_emb
    np.testing.assert_allclose(np.asarray(out), np.asarray(ref), rtol=1e-5, atol=1e-5)

    print("KERNEL_OK")
</pallas_src>

<mosaic_0001>
module attributes {stable_mosaic.version = 11 : i64} {
  func.func @pos_embed_kernel(%arg0: i32, %arg1: i32, %arg2: memref<1x4x33xf32, #tpu.memory_space<vmem>>, %arg3: memref<4x32xf32, #tpu.memory_space<vmem>>, %arg4: memref<1x32xf32, #tpu.memory_space<vmem>>, %arg5: memref<1x32xf32, #tpu.memory_space<vmem>>, %arg6: memref<33x32xf32, #tpu.memory_space<vmem>>, %arg7: memref<1x33x32xf32, #tpu.memory_space<vmem>>) attributes {dimension_semantics = [#tpu.dimension_semantics<parallel>, #tpu.dimension_semantics<parallel>], iteration_bounds = array<i64: 1, 2>, scalar_prefetch = 0 : i64, scratch_operands = 0 : i64, tpu.core_type = #tpu.core_type<tc>, window_params = [{transform_indices = @transform_0, window_bounds = array<i64: 1, 4, 33>}, {pipeline_mode = #tpu.pipeline_mode<synchronous>, transform_indices = @transform_1, window_bounds = array<i64: 4, 32>}, {pipeline_mode = #tpu.pipeline_mode<synchronous>, transform_indices = @transform_2, window_bounds = array<i64: 1, 32>}, {pipeline_mode = #tpu.pipeline_mode<synchronous>, transform_indices = @transform_3, window_bounds = array<i64: 1, 32>}, {transform_indices = @transform_4, window_bounds = array<i64: 33, 32>}, {transform_indices = @transform_5, window_bounds = array<i64: 1, 33, 32>}]} {
    %c0 = arith.constant 0 : index
    %c0_0 = arith.constant 0 : index
    %c0_1 = arith.constant 0 : index
    %0 = vector.load %arg2[%c0, %c0_0, %c0_1] : memref<1x4x33xf32, #tpu.memory_space<vmem>>, vector<1x4x33xf32>
    %1 = vector.shape_cast %0 : vector<1x4x33xf32> to vector<4x33xf32>
    %c0_2 = arith.constant 0 : index
    %c0_3 = arith.constant 0 : index
    %2 = vector.load %arg3[%c0_2, %c0_3] : memref<4x32xf32, #tpu.memory_space<vmem>>, vector<4x32xf32>
    %cst = arith.constant dense<0.000000e+00> : vector<33x32xf32>
    %3 = tpu.matmul %1, %2, %cst {dimension_numbers = #tpu.dot_dimension_numbers<[0], [0], [1], [1], [0, 1, 1, 1], [], []>} : vector<4x33xf32>, vector<4x32xf32>, vector<33x32xf32> -> vector<33x32xf32>
    %c0_4 = arith.constant 0 : index
    %c0_5 = arith.constant 0 : index
    %4 = vector.load %arg6[%c0_4, %c0_5] : memref<33x32xf32, #tpu.memory_space<vmem>>, vector<33x32xf32>
    %5 = arith.addf %3, %4 : vector<33x32xf32>
    %c0_6 = arith.constant 0 : index
    %c0_7 = arith.constant 0 : index
    %6 = vector.load %arg4[%c0_6, %c0_7] : memref<1x32xf32, #tpu.memory_space<vmem>>, vector<1x32xf32>
    %7 = vector.broadcast %6 : vector<1x32xf32> to vector<33x32xf32>
    %8 = arith.addf %5, %7 : vector<33x32xf32>
    %c0_8 = arith.constant 0 : index
    %c0_9 = arith.constant 0 : index
    %c0_10 = arith.constant 0 : index
    %9 = vector.load %arg7[%c0_8, %c0_9, %c0_10] : memref<1x33x32xf32, #tpu.memory_space<vmem>>, vector<1x33x32xf32>
    %10 = vector.shape_cast %9 : vector<1x33x32xf32> to vector<33x32xf32>
    %11 = vector.shape_cast %8 : vector<33x32xf32> to vector<1x33x32xf32>
    tpu.vector_store %arg7[%c0_8, %c0_9, %c0_10], %11 {strides = array<i32>} : memref<1x33x32xf32, #tpu.memory_space<vmem>>, vector<1x33x32xf32>,
    %c0_i32 = arith.constant 0 : i32
    %12 = arith.cmpi eq, %arg0, %c0_i32 : i32
    %13 = arith.extui %12 : i1 to i32
    %c0_i32_11 = arith.constant 0 : i32
    %14 = arith.cmpi ne, %13, %c0_i32_11 : i32
    scf.if %14 {
      %c0_12 = arith.constant 0 : index
      %c0_13 = arith.constant 0 : index
      %15 = vector.load %arg5[%c0_12, %c0_13] : memref<1x32xf32, #tpu.memory_space<vmem>>, vector<1x32xf32>
      %c0_14 = arith.constant 0 : index
      %c0_15 = arith.constant 0 : index
      %16 = vector.load %arg6[%c0_14, %c0_15] : memref<33x32xf32, #tpu.memory_space<vmem>>, vector<1x32xf32>
      %17 = arith.addf %15, %16 : vector<1x32xf32>
      %c0_16 = arith.constant 0 : index
      %c0_17 = arith.constant 0 : index
      %c0_18 = arith.constant 0 : index
      %18 = vector.load %arg7[%c0_16, %c0_17, %c0_18] : memref<1x33x32xf32, #tpu.memory_space<vmem>>, vector<1x1x32xf32>
      %19 = vector.shape_cast %18 : vector<1x1x32xf32> to vector<1x32xf32>
      %20 = vector.shape_cast %17 : vector<1x32xf32> to vector<1x1x32xf32>
      tpu.vector_store %arg7[%c0_16, %c0_17, %c0_18], %20 {strides = array<i32>} : memref<1x33x32xf32, #tpu.memory_space<vmem>>, vector<1x1x32xf32>,
    } else {
    }
    return
  }
  func.func @transform_0(%arg0: i32, %arg1: i32) -> (i32, i32, i32) {
    %c0_i32 = arith.constant 0 : i32
    %c0_i32_0 = arith.constant 0 : i32
    return %arg1, %c0_i32, %arg0 : i32, i32, i32
  }
  func.func @transform_1(%arg0: i32, %arg1: i32) -> (i32, i32) {
    %c0_i32 = arith.constant 0 : i32
    %c0_i32_0 = arith.constant 0 : i32
    %c0_i32_1 = arith.constant 0 : i32
    return %c0_i32, %c0_i32_0 : i32, i32
  }
  func.func @transform_2(%arg0: i32, %arg1: i32) -> (i32, i32) {
    %c0_i32 = arith.constant 0 : i32
    %c0_i32_0 = arith.constant 0 : i32
    %c0_i32_1 = arith.constant 0 : i32
    return %c0_i32, %c0_i32_0 : i32, i32
  }
  func.func @transform_3(%arg0: i32, %arg1: i32) -> (i32, i32) {
    %c0_i32 = arith.constant 0 : i32
    %c0_i32_0 = arith.constant 0 : i32
    %c0_i32_1 = arith.constant 0 : i32
    return %c0_i32, %c0_i32_0 : i32, i32
  }
  func.func @transform_4(%arg0: i32, %arg1: i32) -> (i32, i32) {
    %c0_i32 = arith.constant 0 : i32
    %c0_i32_0 = arith.constant 0 : i32
    return %arg0, %c0_i32 : i32, i32
  }
  func.func @transform_5(%arg0: i32, %arg1: i32) -> (i32, i32, i32) {
    %c0_i32 = arith.constant 0 : i32
    %c0_i32_0 = arith.constant 0 : i32
    return %arg1, %arg0, %c0_i32 : i32, i32, i32
  }
}

</mosaic_0001>

<llo_original>
// kernel: tpu_custom_call.1
$region0: #{tpu_custom_call.1}
  #allocation0 [shape = 'u32[]', space=smem, size = 0x4, offset = 0x4, fixed_abs, tag = 'smem constant byte address 0x4 - core index']
  #allocation1 [shape = 'u32[72,128]{1,0:T(1,128)}', space=vmem, size = 0x9000, scoped, tag = 'internal scratch']
  %s0 = inlined_call_operand.vmem [shape: f32[2,4,33], index: 0, kind: input, shape index: {}]
  %s1 = inlined_call_operand.vmem [shape: f32[4,32], index: 1, kind: input, shape index: {}]
  %s2 = inlined_call_operand.vmem [shape: f32[1,32], index: 2, kind: input, shape index: {}]
  %s3 = inlined_call_operand.vmem [shape: f32[1,32], index: 3, kind: input, shape index: {}]
  %s4 = inlined_call_operand.vmem [shape: f32[33,32], index: 4, kind: input, shape index: {}]
  %s5 = inlined_call_operand.vmem [shape: f32[2,33,32], index: 5, kind: output, shape index: {}]
  %s6 = sld [smem:[#allocation0]]
  $region57: #{tpu_custom_call.1} parent=0
    _
  %s8 = ssub.s32 1, %s6
  %s9 = scalar_select 0, %s8, %s6
  loop: start=0, step=1, limit=4
  $region2: #{tpu_custom_call.1} parent=0 // loop_pre_header
    _
  $region3: #{tpu_custom_call.1} parent=0 // loop_header
    %s11 = sphi 0, %s15
    %p12 = scmp.ge.s32.totalorder %s11, 4
    %s18 = sphi 0, %s30
    %s19 = sphi 0, %s26
    %s20 = sphi 0, %s18
    %s21 = sphi 0, %s19
    %s22 = sphi 0, %s20
    %s23 = sphi 0, %s21
    %s35 = sphi 0, %s37
    %s38 = sphi 0, %s35
    %s39 = sphi 0, %s38
    %s55 = sphi 0, %s39
    %s59 = sphi 0, %s59
    %s61 = sphi 0, %s59
    %s62 = sphi 0, %s61
    %s76 = sphi 0, %s62
    %s80 = sphi 0, %s80
    %s82 = sphi 0, %s80
    %s83 = sphi 0, %s82
    %s97 = sphi 0, %s83
    %s101 = sphi 0, %s101
    %s103 = sphi 0, %s101
    %s104 = sphi 0, %s103
    %s118 = sphi 0, %s104
    %s124 = sphi 0, %s126
    %s127 = sphi 0, %s124
    %s128 = sphi 0, %s127
    %s144 = sphi 0, %s128
    %s152 = sphi 0, %s154
    %s155 = sphi 0, %s152
    %s156 = sphi 0, %s155
    %s172 = sphi 0, %s156
  $region4: #{tpu_custom_call.1} parent=0 // loop_header_branch
    %14 = sbr.rel (%p12) target = $region8
  $region5: #{tpu_custom_call.1} parent=0 // loop_body
    %s16 = ssub.s32 %s11, 1
    %s17 = ssub.s32 %s11, 2
    %s24 = sadd.s32 1, %s19
    %p25 = scmp.ge.s32.totalorder %s24, 2
    %s26 = scalar_select %p25, 0, %s24
    %s27 = sadd.s32 1, %s18
    %s28 = scalar_select %p25, %s27, %s18
    %p29 = scmp.ge.s32.totalorder %s28, 1
    %s30 = scalar_select %p29, 0, %s28
    %s31 = ssub.s32 %s19, %s26
    %s32 = ssub.s32 %s18, %s30
    %s33 = sor.u32 %s31, %s32
    %p34 = scmp.eq.s32.totalorder %s33, 0
    %s36 = sadd.s32 %s35, 1
    %s37 = scalar_select %p34, %s35, %s36
    %p40 = pneg %p34
    %p41 = scmp.eq.s32.totalorder %s11, 1
    %p42 = por %p40, %p41
    %p43 = scmp.ne.s32.totalorder %s35, %s38
    %p44 = scmp.eq.s32.totalorder %s11, 0
    %p45 = por %p43, %p44
    %p46 = scmp.ne.s32.totalorder %s35, %s38
    %p47 = scmp.eq.s32.totalorder %s16, 1
    %p48 = por %p46, %p47
    %p49 = scmp.ne.s32.totalorder %s38, %s39
    %p50 = scmp.eq.s32.totalorder %s16, 0
    %p51 = por %p49, %p50
    %p52 = scmp.ne.s32.totalorder %s38, %s39
    %p53 = scmp.eq.s32.totalorder %s17, 1
    %p54 = por %p52, %p53
    %p56 = scmp.ne.s32.totalorder %s39, %s55
    %p57 = scmp.eq.s32.totalorder %s17, 0
    %p58 = por %p56, %p57
    %s60 = sadd.s32 %s59, 1
    %p63 = scmp.eq.s32.totalorder %s11, 1
    %p64 = scmp.ne.s32.totalorder %s59, %s61
    %p65 = scmp.eq.s32.totalorder %s11, 0
    %p66 = por %p64, %p65
    %p67 = scmp.ne.s32.totalorder %s59, %s61
    %p68 = scmp.eq.s32.totalorder %s16, 1
    %p69 = por %p67, %p68
    %p70 = scmp.ne.s32.totalorder %s61, %s62
    %p71 = scmp.eq.s32.totalorder %s16, 0
    %p72 = por %p70, %p71
    %p73 = scmp.ne.s32.totalorder %s61, %s62
    %p74 = scmp.eq.s32.totalorder %s17, 1
    %p75 = por %p73, %p74
    %p77 = scmp.ne.s32.totalorder %s62, %s76
    %p78 = scmp.eq.s32.totalorder %s17, 0
    %p79 = por %p77, %p78
    %s81 = sadd.s32 %s80, 1
    %p84 = scmp.eq.s32.totalorder %s11, 1
    %p85 = scmp.ne.s32.totalorder %s80, %s82
    %p86 = scmp.eq.s32.totalorder %s11, 0
    %p87 = por %p85, %p86
    %p88 = scmp.ne.s32.totalorder %s80, %s82
    %p89 = scmp.eq.s32.totalorder %s16, 1
    %p90 = por %p88, %p89
    %p91 = scmp.ne.s32.totalorder %s82, %s83
    %p92 = scmp.eq.s32.totalorder %s16, 0
    %p93 = por %p91, %p92
    %p94 = scmp.ne.s32.totalorder %s82, %s83
    %p95 = scmp.eq.s32.totalorder %s17, 1
    %p96 = por %p94, %p95
    %p98 = scmp.ne.s32.totalorder %s83, %s97
    %p99 = scmp.eq.s32.totalorder %s17, 0
    %p100 = por %p98, %p99
    %s102 = sadd.s32 %s101, 1
    %p105 = scmp.eq.s32.totalorder %s11, 1
    %p106 = scmp.ne.s32.totalorder %s101, %s103
    %p107 = scmp.eq.s32.totalorder %s11, 0
    %p108 = por %p106, %p107
    %p109 = scmp.ne.s32.totalorder %s101, %s103
    %p110 = scmp.eq.s32.totalorder %s16, 1
    %p111 = por %p109, %p110
    %p112 = scmp.ne.s32.totalorder %s103, %s104
    %p113 = scmp.eq.s32.totalorder %s16, 0
    %p114 = por %p112, %p113
    %p115 = scmp.ne.s32.totalorder %s103, %s104
    %p116 = scmp.eq.s32.totalorder %s17, 1
    %p117 = por %p115, %p116
    %p119 = scmp.ne.s32.totalorder %s104, %s118
    %p120 = scmp.eq.s32.totalorder %s17, 0
    %p121 = por %p119, %p120
    %s122 = ssub.s32 %s18, %s30
    %p123 = scmp.eq.s32.totalorder %s122, 0
    %s125 = sadd.s32 %s124, 1
    %s126 = scalar_select %p123, %s124, %s125
    %p129 = pneg %p123
    %p130 = scmp.eq.s32.totalorder %s11, 1
    %p131 = por %p129, %p130
    %p132 = scmp.ne.s32.totalorder %s124, %s127
    %p133 = scmp.eq.s32.totalorder %s11, 0
    %p134 = por %p132, %p133
    %p135 = scmp.ne.s32.totalorder %s124, %s127
    %p136 = scmp.eq.s32.totalorder %s16, 1
    %p137 = por %p135, %p136
    %p138 = scmp.ne.s32.totalorder %s127, %s128
    %p139 = scmp.eq.s32.totalorder %s16, 0
    %p140 = por %p138, %p139
    %p141 = scmp.ne.s32.totalorder %s127, %s128
    %p142 = scmp.eq.s32.totalorder %s17, 1
    %p143 = por %p141, %p142
    %p145 = scmp.ne.s32.totalorder %s128, %s144
    %p146 = scmp.eq.s32.totalorder %s17, 0
    %p147 = por %p145, %p146
    %s148 = ssub.s32 %s19, %s26
    %s149 = ssub.s32 %s18, %s30
    %s150 = sor.u32 %s148, %s149
    %p151 = scmp.eq.s32.totalorder %s150, 0
    %s153 = sadd.s32 %s152, 1
    %s154 = scalar_select %p151, %s152, %s153
    %p157 = pneg %p151
    %p158 = scmp.eq.s32.totalorder %s11, 1
    %p159 = por %p157, %p158
    %p160 = scmp.ne.s32.totalorder %s152, %s155
    %p161 = scmp.eq.s32.totalorder %s11, 0
    %p162 = por %p160, %p161
    %p163 = scmp.ne.s32.totalorder %s152, %s155
    %p164 = scmp.eq.s32.totalorder %s16, 1
    %p165 = por %p163, %p164
    %p166 = scmp.ne.s32.totalorder %s155, %s156
    %p167 = scmp.eq.s32.totalorder %s16, 0
    %p168 = por %p166, %p167
    %p169 = scmp.ne.s32.totalorder %s155, %s156
    %p170 = scmp.eq.s32.totalorder %s17, 1
    %p171 = por %p169, %p170
    %p173 = scmp.ne.s32.totalorder %s156, %s172
    %p174 = scmp.eq.s32.totalorder %s17, 0
    %p175 = por %p173, %p174
    %p176 = scmp.le.s32.totalorder 1, %s11
    %p177 = scmp.lt.s32.totalorder %s11, 3
    %p178 = pnand %p176, %p177
    %p179 = pneg %p178
    // Predicated region
    $region9: #{tpu_custom_call.1} parent=5 // pred_check
      _
    $region10: #{tpu_custom_call.1} parent=5 // pred_check_branch
      %181 = sbr.rel (%p178) target = $region12
    $region11: #{tpu_custom_call.1} parent=5 // pred_region
      %s182 = ssub.s32 %s11, 1
      // Predicated region
      $region13: #{tpu_custom_call.1} parent=11 // pred_check
        %p183 = pneg %p72
      $region14: #{tpu_custom_call.1} parent=11 // pred_check_branch
        %185 = sbr.rel (%p183) target = $region16
      $region15: #{tpu_custom_call.1} parent=11 // pred_region
        _
      $region16: #{tpu_custom_call.1} parent=11 // pred_fallthru
        _
      // Predicated region
      $region17: #{tpu_custom_call.1} parent=11 // pred_check
        %p186 = pneg %p93
      $region18: #{tpu_custom_call.1} parent=11 // pred_check_branch
        %188 = sbr.rel (%p186) target = $region20
      $region19: #{tpu_custom_call.1} parent=11 // pred_region
        _
      $region20: #{tpu_custom_call.1} parent=11 // pred_fallthru
        _
      // Predicated region
      $region21: #{tpu_custom_call.1} parent=11 // pred_check
        %p189 = pneg %p114
      $region22: #{tpu_custom_call.1} parent=11 // pred_check_branch
        %191 = sbr.rel (%p189) target = $region24
      $region23: #{tpu_custom_call.1} parent=11 // pred_region
        _
      $region24: #{tpu_custom_call.1} parent=11 // pred_fallthru
        _
      // Predicated region
      $region25: #{tpu_custom_call.1} parent=11 // pred_check
        %p192 = pneg %p140
      $region26: #{tpu_custom_call.1} parent=11 // pred_check_branch
        %194 = sbr.rel (%p192) target = $region28
      $region27: #{tpu_custom_call.1} parent=11 // pred_region
        %s195 = smul.u32 5, %s20
        %p196 = scmp.lt.s32.totalorder %s195, 4
        %s197 = scalar_select %p196, %s195, 4
        %s198 = smul.addr %s197, 8
        %s199 = scalar_lea.vmem %s4, %s198
        %s200 = smul.u32 5, %s20
      $region28: #{tpu_custom_call.1} parent=11 // pred_fallthru
        _
    $region12: #{tpu_custom_call.1} parent=5 // pred_fallthru
      _
    %p201 = scmp.lt.s32.totalorder %s11, 2
    // Predicated region
    $region29: #{tpu_custom_call.1} parent=5 // pred_check
      %p202 = pneg %p201
    $region30: #{tpu_custom_call.1} parent=5 // pred_check_branch
      %204 = sbr.rel (%p202) target = $region32
    $region31: #{tpu_custom_call.1} parent=5 // pred_region
      // Predicated region
      $region33: #{tpu_custom_call.1} parent=31 // pred_check
        %p205 = pneg %p45
      $region34: #{tpu_custom_call.1} parent=31 // pred_check_branch
        %207 = sbr.rel (%p205) target = $region36
      $region35: #{tpu_custom_call.1} parent=31 // pred_region
        %p208 = scmp.lt.s32.totalorder %s19, 1
        %s209 = scalar_select %p208, %s19, 1
        %p210 = scmp.lt.s32.totalorder %s18, 0
        %s211 = scalar_select %p210, %s18, 0
        %s212 = sadd.s32 %s211, %s209
        %s213 = smul.addr %s212, 4
        %s214 = scalar_lea.vmem %s0, %s213
      $region36: #{tpu_custom_call.1} parent=31 // pred_fallthru
        _
    $region32: #{tpu_custom_call.1} parent=5 // pred_fallthru
      _
    %p215 = scmp.le.s32.totalorder 1, %s11
    %p216 = scmp.lt.s32.totalorder %s11, 3
    %p217 = pnand %p215, %p216
    %p218 = pneg %p217
    // Predicated region
    $region37: #{tpu_custom_call.1} parent=5 // pred_check
      _
    $region38: #{tpu_custom_call.1} parent=5 // pred_check_branch
      %220 = sbr.rel (%p217) target = $region40
    $region39: #{tpu_custom_call.1} parent=5 // pred_region
      %s221 = ssub.s32 %s11, 1
      %p222 = scmp.lt.s32.totalorder %s21, 1
      %s223 = scalar_select %p222, %s21, 1
      %p224 = scmp.lt.s32.totalorder %s20, 0
      %s225 = scalar_select %p224, %s20, 0
      %s226 = sadd.s32 %s225, %s223
      %s227 = smul.addr %s226, 4
      %s228 = scalar_lea.vmem %s0, %s227
      %p229 = pneg %p51
      %p230 = pneg %p48
      %p231 = pneg %p72
      %p232 = pneg %p69
      %p233 = pneg %p93
      %p234 = pneg %p90
      %p235 = pneg %p114
      %p236 = pneg %p111
      %s237 = smul.u32 5, %s20
      %p238 = scmp.lt.s32.totalorder %s237, 4
      %s239 = scalar_select %p238, %s237, 4
      %s240 = smul.addr %s239, 8
      %s241 = scalar_lea.vmem %s4, %s240
      %p242 = pneg %p140
      %p243 = pneg %p137
      %p244 = pneg %p168
      %p245 = pneg %p165
      %s246 = smul.u32 5, %s20
      %p247 = scmp.lt.s32.totalorder %s21, 1
      %s248 = scalar_select %p247, %s21, 1
      %p249 = scmp.lt.s32.totalorder %s246, 4
      %s250 = scalar_select %p249, %s246, 4
      %s251 = smul.addr %s248, 5
      %s252 = sadd.s32 %s250, %s251
      %s253 = smul.addr %s252, 8
      %s254 = scalar_lea.vmem %s5, %s253
      %p255 = scmp.lt.s32.totalorder %s21, 1
      %s256 = scalar_select %p255, %s21, 1
      %p257 = scmp.lt.s32.totalorder %s20, 0
      %s258 = scalar_select %p257, %s20, 0
      %s259 = sadd.s32 %s258, %s256
      %s260 = smul.addr %s259, 4
      %s261 = scalar_lea.vmem %s0, %s260
      %s262 = smul.u32 5, %s20
      %p263 = scmp.lt.s32.totalorder %s262, 4
      %s264 = scalar_select %p263, %s262, 4
      %s265 = smul.addr %s264, 8
      %s266 = scalar_lea.vmem %s4, %s265
      %s267 = smul.u32 5, %s20
      %s268 = smul.u32 5, %s20
      %p269 = scmp.lt.s32.totalorder %s21, 1
      %s270 = scalar_select %p269, %s21, 1
      %p271 = scmp.lt.s32.totalorder %s268, 4
      %s272 = scalar_select %p271, %s268, 4
      %s273 = smul.addr %s270, 5
      %s274 = sadd.s32 %s272, %s273
      %s275 = smul.addr %s274, 8
      %s276 = scalar_lea.vmem %s5, %s275
      %s277 = smul.u32 5, %s20
      %v278 = vld [vmem:[%s261] sm:$0xf]
      %v279 = vld [vmem:[%s1] sm:$0xf]
      %v280 = vld [vmem:[%s266] sm:$0xff]
      %v281 = vld [vmem:[%s266 + $0x8] sm:$0xff]
      %v282 = vld [vmem:[%s266 + $0x10] sm:$0xff]
      %v283 = vld [vmem:[%s266 + $0x18] sm:$0xff]
      %v284 = vld [vmem:[%s266 + $0x20] sm:$0x1]
      %285 = vxpose.xlu0.b32.start [1/16] %v278, 128
      %286 = vxpose.xlu0.b32.cont [2/16] 0.0, 128
      %287 = vxpose.xlu0.b32.cont [3/16] 0.0, 128
      %288 = vxpose.xlu0.b32.cont [4/16] 0.0, 128
      %289 = vxpose.xlu0.b32.cont [5/16] 0.0, 128
      %290 = vxpose.xlu0.b32.cont [6/16] 0.0, 128
      %291 = vxpose.xlu0.b32.cont [7/16] 0.0, 128
      %292 = vxpose.xlu0.b32.cont [8/16] 0.0, 128
      %293 = vxpose.xlu0.b32.cont [9/16] 0.0, 128
      %294 = vxpose.xlu0.b32.cont [10/16] 0.0, 128
      %295 = vxpose.xlu0.b32.cont [11/16] 0.0, 128
      %296 = vxpose.xlu0.b32.cont [12/16] 0.0, 128
      %297 = vxpose.xlu0.b32.cont [13/16] 0.0, 128
      %298 = vxpose.xlu0.b32.cont [14/16] 0.0, 128
      %299 = vxpose.xlu0.b32.cont [15/16] 0.0, 128
      %300 = vxpose.xlu0.b32.end [16/16] 0.0, 128
      %v301 = vpop.trf.xlu0
      %v302 = vpop.trf.xlu0
      %v303 = vpop.trf.xlu0
      %v304 = vpop.trf.xlu0
      %v305 = vpop.trf.xlu0
      %v306 = vpop.trf.xlu0
      %v307 = vpop.trf.xlu0
      %v308 = vpop.trf.xlu0
      %v309 = vpop.trf.xlu0
      %v310 = vpop.trf.xlu0
      %v311 = vpop.trf.xlu0
      %v312 = vpop.trf.xlu0
      %v313 = vpop.trf.xlu0
      %v314 = vpop.trf.xlu0
      %v315 = vpop.trf.xlu0
      %v316 = vpop.trf.xlu0
      %vm317 = vcmask 31744
      %v319 = vsel %vm317, %v301, 0
      %v322 = vsel %vm317, %v302, 0
      %v325 = vsel %vm317, %v303, 0
      %v328 = vsel %vm317, %v304, 0
      %v331 = vsel %vm317, %v305, 0
      %vm333 = vcmask 1043456
      %v335 = vsel %vm333, %v279, 0
      %337 = vmatpush.msra.mxu0 0.0
      %338 = vmatpush.msra.mxu0 0.0
      %339 = vmatpush.msra.mxu0 0.0
      %340 = vmatpush.msra.mxu0 0.0
      %341 = vmatpush.msra.mxu0 0.0
      %342 = vmatpush.msra.mxu0 0.0
      %343 = vmatpush.msra.mxu0 0.0
      %344 = vmatpush.msra.mxu0 0.0
      %345 = vmatpush.msra.mxu0 0.0
      %346 = vmatpush.msra.mxu0 0.0
      %347 = vmatpush.msra.mxu0 0.0
      %348 = vmatpush.msra.mxu0 0.0
      %349 = vmatpush.msra.mxu0 0.0
      %350 = vmatpush.msra.mxu0 0.0
      %351 = vmatpush.msra.mxu0 0.0
      %352 = vmatpush.msra.mxu0 %v335
      %353 = vmatmul.f32.gmra.mxu0 %v319
      %v354 = vpop.f32.mrf.mxu0
      %v355 = vadd.f32 %v280, %v354
      %356 = vmatmul.f32.gmra.mxu0 %v322
      %v357 = vpop.f32.mrf.mxu0
      %v358 = vadd.f32 %v281, %v357
      %359 = vmatmul.f32.gmra.mxu0 %v325
      %v360 = vpop.f32.mrf.mxu0
      %v361 = vadd.f32 %v282, %v360
      %362 = vmatmul.f32.gmra.mxu0 %v328
      %v363 = vpop.f32.mrf.mxu0
      %v364 = vadd.f32 %v283, %v363
      %365 = vmatmul.f32.gmra.mxu0 %v331
      %v366 = vpop.f32.mrf.mxu0
      %v367 = vadd.f32 %v284, %v366
      %368 = vdwg.mxu0
      %v369 = vld [vmem:[%s2] sm:$0x1]
      %v371 = vperm.slane %v369, 0
      %v373 = vadd.f32 %v355, %v371
      %v374 = vadd.f32 %v358, %v371
      %v375 = vadd.f32 %v361, %v371
      %v376 = vadd.f32 %v364, %v371
      %v377 = vadd.f32 %v367, %v371
      %vm378 = vcmask 261120
      %379 = vst.msk [vmem:[%s276] sm:$0xff] %vm378, %v373
      %380 = vst.msk [vmem:[%s276 + $0x8] sm:$0xff] %vm378, %v374
      %381 = vst.msk [vmem:[%s276 + $0x10] sm:$0xff] %vm378, %v375
      %382 = vst.msk [vmem:[%s276 + $0x18] sm:$0xff] %vm378, %v376
      %vm383 = vcmask 253952
      %384 = vst.msk [vmem:[%s276 + $0x20] sm:$0x1] %vm383, %v377
      %p385 = scmp.eq.s32.totalorder %s20, 0
      // Predicated region
      $region41: #{tpu_custom_call.1} parent=39 // pred_check
        %p386 = pneg %p385
      $region42: #{tpu_custom_call.1} parent=39 // pred_check_branch
        %388 = sbr.rel (%p386) target = $region44
      $region43: #{tpu_custom_call.1} parent=39 // pred_region
        %v389 = vld [vmem:[%s3] sm:$0x1]
        %v390 = vld [vmem:[%s266] sm:$0x1]
        %v391 = vadd.f32 %v389, %v390
        %392 = vst.msk [vmem:[%s276] sm:$0x1] %vm383, %v391
      $region44: #{tpu_custom_call.1} parent=39 // pred_fallthru
        _
      %s393 = smul.u32 5, %s20
      %p394 = scmp.lt.s32.totalorder %s21, 1
      %s395 = scalar_select %p394, %s21, 1
      %p396 = scmp.lt.s32.totalorder %s393, 4
      %s397 = scalar_select %p396, %s393, 4
      %s398 = smul.addr %s395, 5
      %s399 = sadd.s32 %s397, %s398
      %s400 = smul.addr %s399, 8
      %s401 = scalar_lea.vmem %s5, %s400
      // Predicated region
      $region45: #{tpu_custom_call.1} parent=39 // pred_check
        %p402 = pneg %p165
      $region46: #{tpu_custom_call.1} parent=39 // pred_check_branch
        %404 = sbr.rel (%p402) target = $region48
      $region47: #{tpu_custom_call.1} parent=39 // pred_region
        %s405 = smul.u32 5, %s20
      $region48: #{tpu_custom_call.1} parent=39 // pred_fallthru
        _
    $region40: #{tpu_custom_call.1} parent=5 // pred_fallthru
      _
    %p406 = scmp.le.s32.totalorder 2, %s11
    // Predicated region
    $region49: #{tpu_custom_call.1} parent=5 // pred_check
      %p407 = pneg %p406
    $region50: #{tpu_custom_call.1} parent=5 // pred_check_branch
      %409 = sbr.rel (%p407) target = $region52
    $region51: #{tpu_custom_call.1} parent=5 // pred_region
      %s410 = ssub.s32 %s11, 2
      // Predicated region
      $region53: #{tpu_custom_call.1} parent=51 // pred_check
        %p411 = pneg %p171
      $region54: #{tpu_custom_call.1} parent=51 // pred_check_branch
        %413 = sbr.rel (%p411) target = $region56
      $region55: #{tpu_custom_call.1} parent=51 // pred_region
        %s414 = smul.u32 5, %s22
        %p415 = scmp.lt.s32.totalorder %s23, 1
        %s416 = scalar_select %p415, %s23, 1
        %p417 = scmp.lt.s32.totalorder %s414, 4
        %s418 = scalar_select %p417, %s414, 4
        %s419 = smul.addr %s416, 5
        %s420 = sadd.s32 %s418, %s419
        %s421 = smul.addr %s420, 8
        %s422 = scalar_lea.vmem %s5, %s421
      $region56: #{tpu_custom_call.1} parent=51 // pred_fallthru
        _
    $region52: #{tpu_custom_call.1} parent=5 // pred_fallthru
      _
  $region6: #{tpu_custom_call.1} parent=0 // loop_footer
    %s15 = sadd.s32 1, %s11
  $region7: #{tpu_custom_call.1} parent=0 // loop_footer_branch
    %10 = sbr.rel target = $region3
  $region8: #{tpu_custom_call.1} parent=0 // loop_exit
    _

</llo_original>
